<compile_context>
chip_gen: v7x
topology: tpu7x:2x2x1
jax: 0.10.0
libtpu: 0.0.40
codegen_flags: <defaults>
</compile_context>

<pallas_src>
import functools

import jax
import jax.numpy as jnp
from jax.experimental import pallas as pl
from jax.experimental.pallas import tpu as pltpu


def _round_up(x: int, m: int) -> int:
    return ((x + m - 1) // m) * m


# ---------------------------------------------------------------------------
# Path A: small vocabulary -> one-hot matmul on the MXU.
# ---------------------------------------------------------------------------
def _embed_onehot_kernel(idx_ref, emb_ref, out_ref):
    # idx_ref: (T, 1) int32 token ids for this tile (VMEM)
    # emb_ref: (V, D) full embedding table, resident in VMEM across the grid
    # out_ref: (T, D) output tile
    T = idx_ref.shape[0]
    V = emb_ref.shape[0]
    ids = idx_ref[...]                                        # (T, 1)
    vocab = jax.lax.broadcasted_iota(jnp.int32, (T, V), 1)    # (T, V)
    one_hot = (ids == vocab).astype(emb_ref.dtype)            # (T, V)
    out_ref[...] = jnp.dot(
        one_hot, emb_ref[...], preferred_element_type=jnp.float32
    ).astype(out_ref.dtype)


# ---------------------------------------------------------------------------
# Path B: larger vocabulary -> scalar-indexed row gather from VMEM-resident
# table, indices scalar-prefetched into SMEM.
# ---------------------------------------------------------------------------
_GATHER_UNROLL = 8  # T is always a multiple of 8 (see wrapper)


def _embed_rowgather_kernel(idx_smem, emb_ref, out_ref):
    # idx_smem: (N_pad,) int32 token ids in SMEM (scalar prefetch)
    # emb_ref:  (V, D) full embedding table, resident in VMEM
    # out_ref:  (T, D) output tile
    T = out_ref.shape[0]
    base = pl.program_id(0) * T

    def body(g, carry):
        t0 = g * _GATHER_UNROLL
        for u in range(_GATHER_UNROLL):   # unrolled: 8 independent row copies
            t = t0 + u
            row = idx_smem[base + t]
            out_ref[pl.ds(t, 1), :] = emb_ref[pl.ds(row, 1), :]
        return carry

    jax.lax.fori_loop(0, T // _GATHER_UNROLL, body, 0, unroll=False)


_ONE_HOT_MAX_VOCAB = 1024  # beyond this a (T, V) one-hot gets too wide -> row gather


@functools.partial(jax.jit, static_argnames=("tokens_per_step",))
def poi_embeddings(traj, emb_table, *, tokens_per_step=256):
    """Embedding lookup: traj (B, S) integer ids, emb_table (V, D) -> (B, S, D)."""
    B, S = traj.shape
    V, D = emb_table.shape
    N = B * S

    # Pad the table so the VMEM-resident tile is (8, 128)-aligned and the
    # output stores are lane-dense (unmasked full-width vst).
    V_pad = _round_up(V, 8)
    D_pad = _round_up(D, 128)
    if (V_pad, D_pad) != (V, D):
        emb = jnp.pad(emb_table, ((0, V_pad - V), (0, D_pad - D)))
    else:
        emb = emb_table

    # Token tile: multiple of 8 sublanes (full-vreg f32 stores), capped.
    T = min(int(tokens_per_step), _round_up(N, 8))
    n_tiles = pl.cdiv(N, T)
    N_pad = n_tiles * T

    idx = traj.reshape(N).astype(jnp.int32)
    idx = jnp.clip(idx, 0, V - 1)          # guard OOB ids (would otherwise fault)
    idx = jnp.pad(idx, (0, N_pad - N))     # pad tail tokens with id 0

    # VMEM budget: resident table + double-buffered (T, D) out tiles + indices.
    itemsize = emb.dtype.itemsize
    vmem_needed = (V_pad * D_pad * itemsize
                   + 4 * T * D_pad * itemsize
                   + 4 * N_pad
                   + (1 << 20))
    compiler_kwargs = dict(dimension_semantics=("parallel",))
    if vmem_needed > 24 * 1024 * 1024:
        # TODO(synk): if the table itself exceeds usable VMEM (~48 MiB on v7x),
        # chunk the vocab axis (masked one-hot accumulate) or fall back to
        # batched, deeply-buffered HBM row DMAs instead of a resident table.
        compiler_kwargs["vmem_limit_bytes"] = min(int(vmem_needed * 1.3), 120 << 20)
    compiler_params = pltpu.CompilerParams(**compiler_kwargs)

    if V_pad <= _ONE_HOT_MAX_VOCAB:
        out_flat = pl.pallas_call(
            _embed_onehot_kernel,
            out_shape=jax.ShapeDtypeStruct((N_pad, D_pad), emb.dtype),
            grid_spec=pltpu.PrefetchScalarGridSpec(
                num_scalar_prefetch=0,
                grid=(n_tiles,),
                in_specs=[
                    pl.BlockSpec((T, 1), lambda i: (i, 0)),        # per-tile ids
                    pl.BlockSpec((V_pad, D_pad), lambda i: (0, 0)),  # table, VMEM-resident
                ],
                out_specs=pl.BlockSpec((T, D_pad), lambda i: (i, 0)),
            ),
            compiler_params=compiler_params,
        )(idx[:, None], emb)
    else:
        out_flat = pl.pallas_call(
            _embed_rowgather_kernel,
            out_shape=jax.ShapeDtypeStruct((N_pad, D_pad), emb.dtype),
            grid_spec=pltpu.PrefetchScalarGridSpec(
                num_scalar_prefetch=1,                             # ids -> SMEM
                grid=(n_tiles,),
                in_specs=[pl.BlockSpec((V_pad, D_pad), lambda i, idx_ref: (0, 0))],
                out_specs=pl.BlockSpec((T, D_pad), lambda i, idx_ref: (i, 0)),
            ),
            compiler_params=compiler_params,
        )(idx, emb)

    return out_flat[:N, :D].reshape(B, S, D)


if __name__ == "__main__":
    key = jax.random.PRNGKey(0)
    k_emb, k_traj, k_emb2, k_traj2, k_emb3, k_traj3 = jax.random.split(key, 6)

    # --- Test 1: small vocab (one-hot MXU path), shapes consistent with module.
    poi_size, poi_embed_dim = 64, 128
    B, S = 2, 8
    emb_table = jax.random.normal(k_emb, (poi_size, poi_embed_dim), dtype=jnp.float32)
    traj = jax.random.randint(k_traj, (B, S), minval=0, maxval=poi_size, dtype=jnp.int32)

    out = jax.block_until_ready(poi_embeddings(traj, emb_table))
    ref = jnp.take(emb_table, traj, axis=0)
    assert out.shape == (B, S, poi_embed_dim)
    assert out.dtype == jnp.float32
    assert jnp.allclose(out, ref, atol=1e-6), "one-hot embedding path mismatch"

    # --- Test 2: larger vocab exercises the VMEM-resident row-gather path.
    V2, D2 = 4096, 128
    B2, S2 = 4, 100
    emb_table2 = jax.random.normal(k_emb2, (V2, D2), dtype=jnp.float32)
    traj2 = jax.random.randint(k_traj2, (B2, S2), minval=0, maxval=V2, dtype=jnp.int32)

    out2 = jax.block_until_ready(poi_embeddings(traj2, emb_table2))
    ref2 = jnp.take(emb_table2, traj2, axis=0)
    assert out2.shape == (B2, S2, D2)
    assert jnp.allclose(out2, ref2), "row-gather embedding path mismatch"

    # --- Test 3: ragged shapes (V not multiple of 8, D not multiple of 128).
    V3, D3 = 50, 40
    B3, S3 = 2, 7
    emb_table3 = jax.random.normal(k_emb3, (V3, D3), dtype=jnp.float32)
    traj3 = jax.random.randint(k_traj3, (B3, S3), minval=0, maxval=V3, dtype=jnp.int32)

    out3 = jax.block_until_ready(poi_embeddings(traj3, emb_table3))
    ref3 = jnp.take(emb_table3, traj3, axis=0)
    assert out3.shape == (B3, S3, D3)
    assert jnp.allclose(out3, ref3, atol=1e-6), "padded-shape embedding path mismatch"

    print("KERNEL_OK")
</pallas_src>

<mosaic_0001>
module attributes {stable_mosaic.version = 11 : i64} {
  func.func @_embed_onehot_kernel(%arg0: i32, %arg1: memref<16x1xi32, #tpu.memory_space<vmem>>, %arg2: memref<64x128xf32, #tpu.memory_space<vmem>>, %arg3: memref<16x128xf32, #tpu.memory_space<vmem>>) attributes {dimension_semantics = [#tpu.dimension_semantics<parallel>], iteration_bounds = array<i64: 1>, scalar_prefetch = 0 : i64, scratch_operands = 0 : i64, tpu.core_type = #tpu.core_type<tc>, window_params = [{transform_indices = @transform_0, window_bounds = array<i64: 16, 1>}, {pipeline_mode = #tpu.pipeline_mode<synchronous>, transform_indices = @transform_1, window_bounds = array<i64: 64, 128>}, {transform_indices = @transform_2, window_bounds = array<i64: 16, 128>}]} {
    %c0 = arith.constant 0 : index
    %c0_0 = arith.constant 0 : index
    %0 = vector.load %arg1[%c0, %c0_0] : memref<16x1xi32, #tpu.memory_space<vmem>>, vector<16x1xi32>
    %1 = tpu.iota {dimensions = array<i32: 1>} : vector<16x64xi32>
    %2 = vector.broadcast %0 : vector<16x1xi32> to vector<16x64xi32>
    %3 = arith.cmpi eq, %2, %1 : vector<16x64xi32>
    %4 = arith.extui %3 : vector<16x64xi1> to vector<16x64xi32>
    %5 = arith.sitofp %4 : vector<16x64xi32> to vector<16x64xf32>
    %c0_1 = arith.constant 0 : index
    %c0_2 = arith.constant 0 : index
    %6 = vector.load %arg2[%c0_1, %c0_2] : memref<64x128xf32, #tpu.memory_space<vmem>>, vector<64x128xf32>
    %cst = arith.constant dense<0.000000e+00> : vector<16x128xf32>
    %7 = tpu.matmul %5, %6, %cst {dimension_numbers = #tpu.dot_dimension_numbers<[1], [0], [0], [1], [0, 0, 1, 1], [], []>} : vector<16x64xf32>, vector<64x128xf32>, vector<16x128xf32> -> vector<16x128xf32>
    %c0_3 = arith.constant 0 : index
    %c0_4 = arith.constant 0 : index
    %8 = vector.load %arg3[%c0_3, %c0_4] : memref<16x128xf32, #tpu.memory_space<vmem>>, vector<16x128xf32>
    tpu.vector_store %arg3[%c0_3, %c0_4], %7 {strides = array<i32>} : memref<16x128xf32, #tpu.memory_space<vmem>>, vector<16x128xf32>,
    return
  }
  func.func @transform_0(%arg0: i32) -> (i32, i32) {
    %c0_i32 = arith.constant 0 : i32
    %c0_i32_0 = arith.constant 0 : i32
    return %arg0, %c0_i32 : i32, i32
  }
  func.func @transform_1(%arg0: i32) -> (i32, i32) {
    %c0_i32 = arith.constant 0 : i32
    %c0_i32_0 = arith.constant 0 : i32
    %c0_i32_1 = arith.constant 0 : i32
    return %c0_i32, %c0_i32_0 : i32, i32
  }
  func.func @transform_2(%arg0: i32) -> (i32, i32) {
    %c0_i32 = arith.constant 0 : i32
    %c0_i32_0 = arith.constant 0 : i32
    return %arg0, %c0_i32 : i32, i32
  }
}

</mosaic_0001>

<llo_original>
// kernel: poi_embeddings.1
$region0: #{poi_embeddings.1}
  #allocation0 [shape = 'u32[]', space=smem, size = 0x4, offset = 0x4, fixed_abs, tag = 'smem constant byte address 0x4 - core index']
  #allocation1 [shape = 'u32[144,128]{1,0:T(1,128)}', space=vmem, size = 0x12000, scoped, tag = 'internal scratch']
  %s0 = inlined_call_operand.vmem [shape: s32[16,1], index: 0, kind: input, shape index: {}]
  %s1 = inlined_call_operand.hbm [shape: f32[64,128], index: 1, kind: input, shape index: {}]
  %s2 = inlined_call_operand.hbm [shape: f32[16,128], index: 2, kind: output, shape index: {}]
  %s3 = sld [smem:[#allocation0]]
  $region22: #{poi_embeddings.1} parent=0
    _
  %s5 = ssub.s32 1, %s3
  %s6 = scalar_select 0, %s5, %s3
  $region1: #{poi_embeddings.1} parent=0
    #allocation2 [shape = 'u8[32768]{0}', space=vmem, size = 0x8000, scoped, tag = 'input window, operand 1, single buffered']
    #allocation3 [shape = 's32[1]{0}', space=sflag, size = 0x4, scoped, tag = 'scoped memory for poi_embeddings.1']
    #allocation4 [shape = 's32[1]{0}', space=sflag, size = 0x4, scoped, tag = 'scoped memory for poi_embeddings.1']
    #allocation5 [shape = 'u8[8192]{0}', space=vmem, size = 0x2000, scoped, tag = 'output window, operand 0, single buffered']
    %7 = vsyncpa [#allocation3], 0
    %8 = vsyncpa [#allocation4], 0
    // Predicated region
    $region2: #{poi_embeddings.1} parent=1 // pred_check
      _
    $region3: #{poi_embeddings.1} parent=1 // pred_check_branch
      %10 = sbr.rel (0) target = $region5
    $region4: #{poi_embeddings.1} parent=1 // pred_region
      _
    $region5: #{poi_embeddings.1} parent=1 // pred_fallthru
      _
    // Predicated region
    $region6: #{poi_embeddings.1} parent=1 // pred_check
      _
    $region7: #{poi_embeddings.1} parent=1 // pred_check_branch
      %12 = sbr.rel (0) target = $region9
    $region8: #{poi_embeddings.1} parent=1 // pred_region
      %s14 = ssub.s32 1024, 1024
      %15 = vsyncadd [#allocation3], %s14
      %s16 = sshll.u32 [#allocation2], 4
      %s17 = int_to_ptr.vmem [resolvable:$true] %s16
      %22 = dma.hbm_to_vmem [thread:$0]  %s1, 1024, %s17, [#allocation3], 128, 128, 8
    $region9: #{poi_embeddings.1} parent=1 // pred_fallthru
      _
    // Predicated region
    $region10: #{poi_embeddings.1} parent=1 // pred_check
      _
    $region11: #{poi_embeddings.1} parent=1 // pred_check_branch
      %24 = sbr.rel (0) target = $region13
    $region12: #{poi_embeddings.1} parent=1 // pred_region
      %25 = dma.done [#allocation3], 1024
    $region13: #{poi_embeddings.1} parent=1 // pred_fallthru
      _
    %v26 = vld [vmem:[%s0] sm:$0xff]
    %v27 = vld [vmem:[%s0 + $0x8] sm:$0xff]
    %v28 = vlaneseq
    %v29 = vand.u32 %v28, 127
    %30 = vset.pattern.permute.xlu0 0
    %31 = vperm.xlu0 %30, %v26
    %v32 = vpop.permute.xlu0 %31
    %33 = vset.pattern.permute.xlu0 0
    %34 = vperm.xlu0 %33, %v27
    %v35 = vpop.permute.xlu0 %34
    %vm36 = vcmp.eq.s32.totalorder %v32, %v29
    %vm37 = vcmp.eq.s32.totalorder %v35, %v29
    %v38 = vsel %vm36, 1, 0
    %v39 = vsel %vm37, 1, 0
    %v40 = vcvt.s32.f32 %v38
    %v41 = vcvt.s32.f32 %v39
    %v42 = vld [vmem:[#allocation2] sm:$0xff]
    %v43 = vld [vmem:[#allocation2 + $0x8] sm:$0xff]
    %v44 = vld [vmem:[#allocation2 + $0x10] sm:$0xff]
    %v45 = vld [vmem:[#allocation2 + $0x18] sm:$0xff]
    %v46 = vld [vmem:[#allocation2 + $0x20] sm:$0xff]
    %v47 = vld [vmem:[#allocation2 + $0x28] sm:$0xff]
    %v48 = vld [vmem:[#allocation2 + $0x30] sm:$0xff]
    %v49 = vld [vmem:[#allocation2 + $0x38] sm:$0xff]
    %vm50 = vcmask 523264
    %v52 = vsel %vm50, %v40, 0
    %v55 = vsel %vm50, %v41, 0
    %57 = vmatprep.subr.mxu0 0.0
    %58 = vmatpush1.msra.mxu0 %v42
    %59 = vmatprep.subr.mxu0 0.0
    %60 = vmatpush1.msra.mxu0 %v43
    %61 = vmatprep.subr.mxu0 0.0
    %62 = vmatpush1.msra.mxu0 %v44
    %63 = vmatprep.subr.mxu0 0.0
    %64 = vmatpush1.msra.mxu0 %v45
    %65 = vmatprep.subr.mxu0 0.0
    %66 = vmatpush1.msra.mxu0 %v46
    %67 = vmatprep.subr.mxu0 0.0
    %68 = vmatpush1.msra.mxu0 %v47
    %69 = vmatprep.subr.mxu0 0.0
    %70 = vmatpush1.msra.mxu0 %v48
    %71 = vmatprep.subr.mxu0 0.0
    %72 = vmatpush1.msra.mxu0 %v49
    %73 = vmatprep.subr.mxu0 0.0
    %74 = vmatpush1.msra.mxu0 0.0
    %75 = vmatprep.subr.mxu0 0.0
    %76 = vmatpush1.msra.mxu0 0.0
    %77 = vmatprep.subr.mxu0 0.0
    %78 = vmatpush1.msra.mxu0 0.0
    %79 = vmatprep.subr.mxu0 0.0
    %80 = vmatpush1.msra.mxu0 0.0
    %81 = vmatprep.subr.mxu0 0.0
    %82 = vmatpush1.msra.mxu0 0.0
    %83 = vmatprep.subr.mxu0 0.0
    %84 = vmatpush1.msra.mxu0 0.0
    %85 = vmatprep.subr.mxu0 0.0
    %86 = vmatpush1.msra.mxu0 0.0
    %87 = vmatprep.subr.mxu0 0.0
    %88 = vmatpush1.msra.mxu0 0.0
    %89 = vmatprep.subr.mxu0 0.0
    %90 = vmatpush1.msra.mxu0 0.0
    %91 = vmatprep.subr.mxu0 0.0
    %92 = vmatpush1.msra.mxu0 0.0
    %93 = vmatprep.subr.mxu0 0.0
    %94 = vmatpush1.msra.mxu0 0.0
    %95 = vmatprep.subr.mxu0 0.0
    %96 = vmatpush1.msra.mxu0 0.0
    %97 = vmatprep.subr.mxu0 0.0
    %98 = vmatpush1.msra.mxu0 0.0
    %99 = vmatprep.subr.mxu0 0.0
    %100 = vmatpush1.msra.mxu0 0.0
    %101 = vmatprep.subr.mxu0 0.0
    %102 = vmatpush1.msra.mxu0 0.0
    %103 = vmatprep.subr.mxu0 0.0
    %104 = vmatpush1.msra.mxu0 0.0
    %105 = vmatprep.subr.mxu0 0.0
    %106 = vmatpush1.msra.mxu0 0.0
    %107 = vmatprep.subr.mxu0 0.0
    %108 = vmatpush1.msra.mxu0 0.0
    %109 = vmatprep.subr.mxu0 0.0
    %110 = vmatpush1.msra.mxu0 0.0
    %111 = vmatprep.subr.mxu0 0.0
    %112 = vmatpush1.msra.mxu0 0.0
    %113 = vmatprep.subr.mxu0 0.0
    %114 = vmatpush1.msra.mxu0 0.0
    %115 = vmatprep.subr.mxu0 0.0
    %116 = vmatpush1.msra.mxu0 0.0
    %117 = vmatprep.subr.mxu0 0.0
    %118 = vmatpush1.msra.mxu0 0.0
    %119 = vmatprep.subr.mxu0 0.0
    %120 = vmatpush1.msra.mxu0 0.0
    %121 = vmatprep.mubr.f32.mxu0 0.0
    %122 = vmatmul.mubr.f32.gmra.mrb[0].mxu0 %v52
    %v123 = vpop.f32.mrb[0].mxu0
    %v124 = vadd.f32 0.0, %v123
    %v125 = vpop.f32.mrb[0].mxu0
    %126 = vmatprep.mubr.f32.mxu0 0.0
    %127 = vmatmul.mubr.f32.gmra.mrb[0].mxu0 %v55
    %v128 = vpop.f32.mrb[0].mxu0
    %v129 = vadd.f32 0.0, %v128
    %v130 = vpop.f32.mrb[0].mxu0
    %131 = vdwg.mxu0
    %132 = vst [vmem:[#allocation5] sm:$0xff] %v124
    %133 = vst [vmem:[#allocation5 + $0x8] sm:$0xff] %v129
    // Predicated region
    $region14: #{poi_embeddings.1} parent=1 // pred_check
      _
    $region15: #{poi_embeddings.1} parent=1 // pred_check_branch
      %135 = sbr.rel (0) target = $region17
    $region16: #{poi_embeddings.1} parent=1 // pred_region
      %s137 = ssub.s32 256, 256
      %138 = vsyncadd [#allocation4], %s137
      %s139 = sshll.u32 [#allocation5], 4
      %s140 = int_to_ptr.vmem [resolvable:$true] %s139
      %145 = dma.vmem_to_hbm [thread:$0]  %s140, 256, %s2, [#allocation4], 128, 128, 8
    $region17: #{poi_embeddings.1} parent=1 // pred_fallthru
      _
    // Predicated region
    $region18: #{poi_embeddings.1} parent=1 // pred_check
      _
    $region19: #{poi_embeddings.1} parent=1 // pred_check_branch
      %147 = sbr.rel (0) target = $region21
    $region20: #{poi_embeddings.1} parent=1 // pred_region
      %148 = dma.done [#allocation4], 256
    $region21: #{poi_embeddings.1} parent=1 // pred_fallthru
      _
    %149 = vsyncpa [#allocation3], 1
    %150 = vsyncpa [#allocation4], 1

</llo_original>
